<compile_context>
chip_gen: v5e
topology: v5e:2x2
jax: 0.10.0
libtpu: 0.0.40
codegen_flags: <defaults>
</compile_context>

<pallas_src>
import functools

import jax
import jax.numpy as jnp
from jax.experimental import pallas as pl
from jax.experimental.pallas import tpu as pltpu

LANE = 128
SUBLANE = 8


def _round_up(x, m):
    return ((x + m - 1) // m) * m


def critic_kernel(s_ref, a_ref, w1s_ref, w1a_ref, b1_ref,
                  w2_ref, b2_ref, w3_ref, b3_ref, o_ref):
    cdt = w1s_ref.dtype  # bf16 compute dtype for MXU operands

    # layer 1: torch.cat([s, a], 1) @ W1 == s @ W1[:sd] + a @ W1[sd:]
    # (split-K; same MXU work, no concatenated activation in HBM)
    h1 = jnp.dot(s_ref[...].astype(cdt), w1s_ref[...],
                 preferred_element_type=jnp.float32)
    h1 = h1 + jnp.dot(a_ref[...].astype(cdt), w1a_ref[...],
                      preferred_element_type=jnp.float32)
    h1 = jnp.maximum(h1 + b1_ref[...], 0.0)

    # layer 2: (TB, H1) @ (H1, H2), bf16 operands, f32 accumulate
    h2 = jnp.dot(h1.astype(cdt), w2_ref[...], preferred_element_type=jnp.float32)
    h2 = jnp.maximum(h2 + b2_ref[...], 0.0)

    # layer 3: (TB, H2) @ (H2, OUT)
    o = jnp.dot(h2.astype(cdt), w3_ref[...], preferred_element_type=jnp.float32)
    o_ref[...] = (o + b3_ref[...]).astype(o_ref.dtype)   # bf16 store (HBM writeback)


def prepare_critic_params(params, state_dim, compute_dtype=jnp.bfloat16):
    """One-time repack of PyTorch-layout params into kernel layout.

    nn.Linear weights are (out, in); we transpose to (in, out), split W1 by the
    state/action boundary (so the kernel never needs cat([s, a])), zero-pad
    every output (lane) axis to a multiple of 128, cast weights to
    `compute_dtype`, and keep biases in f32.
    """
    w1, b1 = params["w1"], params["b1"]
    w2, b2 = params["w2"], params["b2"]
    w3, b3 = params["w3"], params["b3"]

    in_dim, hidden = w1.shape[1], w1.shape[0]
    hidden2 = w2.shape[0]
    out_dim = w3.shape[0]
    action_dim = in_dim - state_dim
    assert 0 < state_dim < in_dim

    h1_pad = _round_up(hidden, LANE)
    h2_pad = _round_up(hidden2, LANE)
    out_pad = _round_up(out_dim, LANE)

    def pad2(x, rows, cols):
        return jnp.zeros((rows, cols), x.dtype).at[:x.shape[0], :x.shape[1]].set(x)

    w1t = w1.T.astype(jnp.float32)                                 # (in, hidden)
    w1s = pad2(w1t[:state_dim], state_dim, h1_pad).astype(compute_dtype)
    w1a = pad2(w1t[state_dim:], action_dim, h1_pad).astype(compute_dtype)
    w2t = pad2(w2.T.astype(jnp.float32), h1_pad, h2_pad).astype(compute_dtype)
    w3t = pad2(w3.T.astype(jnp.float32), h2_pad, out_pad).astype(compute_dtype)
    b1p = pad2(b1.reshape(1, -1).astype(jnp.float32), 1, h1_pad)
    b2p = pad2(b2.reshape(1, -1).astype(jnp.float32), 1, h2_pad)
    b3p = pad2(b3.reshape(1, -1).astype(jnp.float32), 1, out_pad)

    return {"w1s": w1s, "w1a": w1a, "b1": b1p,
            "w2t": w2t, "b2": b2p, "w3t": w3t, "b3": b3p}


def critic_forward(s, a, prepped, *, out_dim, tile_b=1024,
                   out_store_dtype=jnp.bfloat16):
    """s: (B, state_dim), a: (B, action_dim). Returns (B, out_dim) float32."""
    w1s, w1a, b1 = prepped["w1s"], prepped["w1a"], prepped["b1"]
    w2t, b2 = prepped["w2t"], prepped["b2"]
    w3t, b3 = prepped["w3t"], prepped["b3"]

    state_dim, h1_pad = w1s.shape
    action_dim = w1a.shape[0]
    h2_pad = w2t.shape[1]
    out_pad = w3t.shape[1]

    B = s.shape[0]
    assert a.shape[0] == B
    assert s.shape[1] == state_dim and a.shape[1] == action_dim

    # Pad batch only up to a sublane multiple, and only if needed (no copy for
    # the common aligned case).  The trailing grid block may still be ragged;
    # Pallas masks OOB reads/writes and rows are independent, so that's safe.
    b_pad = _round_up(B, SUBLANE)
    if b_pad != B:
        s = jnp.zeros((b_pad, state_dim), s.dtype).at[:B].set(s)
        a = jnp.zeros((b_pad, action_dim), a.dtype).at[:B].set(a)

    # Batch tile: as large as allowed (amortize per-step pipeline overhead,
    # larger DMAs) but chosen so the grid has >=2 steps when B allows, letting
    # dimension_semantics=("parallel",) shard across v7x's two TensorCores.
    tb = max(SUBLANE, min(tile_b, _round_up(pl.cdiv(b_pad, 2), SUBLANE)))
    grid = (pl.cdiv(b_pad, tb),)

    out_itemsize = jnp.dtype(out_store_dtype).itemsize
    weight_bytes = sum(int(x.size) * x.dtype.itemsize
                       for x in (w1s, w1a, b1, w2t, b2, w3t, b3))

    # Advisory cost estimate for the XLA scheduler.
    flops = 2 * b_pad * (state_dim * h1_pad + action_dim * h1_pad
                         + h1_pad * h2_pad + h2_pad * out_pad)
    bytes_accessed = (int(s.size) * s.dtype.itemsize
                      + int(a.size) * a.dtype.itemsize
                      + weight_bytes
                      + b_pad * out_pad * out_itemsize)
    cost = pl.CostEstimate(flops=flops, transcendentals=0,
                           bytes_accessed=bytes_accessed)

    # Right-size the scoped VMEM limit from the actual tile footprint
    # (double-buffered activations/output + resident weights + f32
    # intermediates), with a 2x margin, clamped to [8 MiB, 32 MiB].
    tile_bytes = (2 * tb * (state_dim + action_dim) * s.dtype.itemsize
                  + 2 * tb * out_pad * out_itemsize
                  + tb * (h1_pad + h2_pad) * 4
                  + 2 * weight_bytes)
    vmem_limit = min(max(2 * tile_bytes, 8 * 1024 * 1024), 32 * 1024 * 1024)

    out = pl.pallas_call(
        critic_kernel,
        out_shape=jax.ShapeDtypeStruct((b_pad, out_pad), out_store_dtype),
        grid=grid,
        in_specs=[
            pl.BlockSpec((tb, state_dim), lambda i: (i, 0)),    # s: tiled over batch
            pl.BlockSpec((tb, action_dim), lambda i: (i, 0)),   # a: tiled over batch
            pl.BlockSpec((state_dim, h1_pad), lambda i: (0, 0)),  # weights/biases resident
            pl.BlockSpec((action_dim, h1_pad), lambda i: (0, 0)),
            pl.BlockSpec((1, h1_pad), lambda i: (0, 0)),
            pl.BlockSpec((h1_pad, h2_pad), lambda i: (0, 0)),
            pl.BlockSpec((1, h2_pad), lambda i: (0, 0)),
            pl.BlockSpec((h2_pad, out_pad), lambda i: (0, 0)),
            pl.BlockSpec((1, out_pad), lambda i: (0, 0)),
        ],
        out_specs=pl.BlockSpec((tb, out_pad), lambda i: (i, 0)),
        compiler_params=pltpu.CompilerParams(
            dimension_semantics=("parallel",),
            vmem_limit_bytes=int(vmem_limit),
        ),
        cost_estimate=cost,
    )(s, a, w1s, w1a, b1, w2t, b2, w3t, b3)

    # Slice off padded rows/columns, then restore f32 for the caller.
    return out[:B, :out_dim].astype(jnp.float32)


def init_critic_params(key, input_size, hidden_size, output_size):
    """Deterministic init mimicking nn.Linear's U(-1/sqrt(fan_in), 1/sqrt(fan_in))."""
    hidden2 = hidden_size // 2
    keys = jax.random.split(key, 6)

    def lin(kw, kb, fan_in, fan_out):
        bound = 1.0 / jnp.sqrt(jnp.float32(fan_in))
        w = jax.random.uniform(kw, (fan_out, fan_in), jnp.float32, -bound, bound)
        b = jax.random.uniform(kb, (fan_out,), jnp.float32, -bound, bound)
        return w, b

    w1, b1 = lin(keys[0], keys[1], input_size, hidden_size)
    w2, b2 = lin(keys[2], keys[3], hidden_size, hidden2)
    w3, b3 = lin(keys[4], keys[5], hidden2, output_size)
    return {"w1": w1, "b1": b1, "w2": w2, "b2": b2, "w3": w3, "b3": b3}


def critic_ref(s, a, params):
    """Pure-JAX f32 reference matching the PyTorch forward exactly."""
    x = jnp.concatenate([s, a], axis=1)
    x = jnp.maximum(x @ params["w1"].T + params["b1"], 0.0)
    x = jnp.maximum(x @ params["w2"].T + params["b2"], 0.0)
    x = x @ params["w3"].T + params["b3"]
    return x


if __name__ == "__main__":
    key = jax.random.PRNGKey(0)
    k_s, k_a, k_p = jax.random.split(key, 3)

    # Small shapes consistent with the module: state+action concat -> input_size.
    batch = 2
    state_dim = 16
    action_dim = 16
    input_size = state_dim + action_dim   # 32
    hidden_size = 32                      # hidden/2 = 16
    output_size = 4

    s = jax.random.normal(k_s, (batch, state_dim), jnp.float32)
    a = jax.random.normal(k_a, (batch, action_dim), jnp.float32)
    params = init_critic_params(k_p, input_size, hidden_size, output_size)

    # One-time weight repack (transpose / split / pad / cast) outside the
    # per-call path.
    prepped = prepare_critic_params(params, state_dim=state_dim)

    fwd = jax.jit(functools.partial(critic_forward, out_dim=output_size,
                                    tile_b=1024))
    out = jax.block_until_ready(fwd(s, a, prepped))

    ref = critic_ref(s, a, params)
    assert out.shape == (batch, output_size)
    err = float(jnp.max(jnp.abs(out - ref)))
    # bf16 weights/activations/output store with f32 accumulation: error well
    # under 3e-2 at these scales (K<=128).
    assert err < 3e-2, f"mismatch vs reference: max abs err {err}"

    print("KERNEL_OK")
</pallas_src>

<mosaic_0001>
module attributes {stable_mosaic.version = 11 : i64} {
  func.func @critic_kernel(%arg0: i32, %arg1: memref<8x16xf32, #tpu.memory_space<vmem>>, %arg2: memref<8x16xf32, #tpu.memory_space<vmem>>, %arg3: memref<16x128xbf16, #tpu.memory_space<vmem>>, %arg4: memref<16x128xbf16, #tpu.memory_space<vmem>>, %arg5: memref<1x128xf32, #tpu.memory_space<vmem>>, %arg6: memref<128x128xbf16, #tpu.memory_space<vmem>>, %arg7: memref<1x128xf32, #tpu.memory_space<vmem>>, %arg8: memref<128x128xbf16, #tpu.memory_space<vmem>>, %arg9: memref<1x128xf32, #tpu.memory_space<vmem>>, %arg10: memref<8x128xbf16, #tpu.memory_space<vmem>>) attributes {dimension_semantics = [#tpu.dimension_semantics<parallel>], iteration_bounds = array<i64: 1>, scalar_prefetch = 0 : i64, scratch_operands = 0 : i64, tpu.core_type = #tpu.core_type<tc>, window_params = [{transform_indices = @transform_0, window_bounds = array<i64: 8, 16>}, {transform_indices = @transform_1, window_bounds = array<i64: 8, 16>}, {pipeline_mode = #tpu.pipeline_mode<synchronous>, transform_indices = @transform_2, window_bounds = array<i64: 16, 128>}, {pipeline_mode = #tpu.pipeline_mode<synchronous>, transform_indices = @transform_3, window_bounds = array<i64: 16, 128>}, {pipeline_mode = #tpu.pipeline_mode<synchronous>, transform_indices = @transform_4, window_bounds = array<i64: 1, 128>}, {pipeline_mode = #tpu.pipeline_mode<synchronous>, transform_indices = @transform_5, window_bounds = array<i64: 128, 128>}, {pipeline_mode = #tpu.pipeline_mode<synchronous>, transform_indices = @transform_6, window_bounds = array<i64: 1, 128>}, {pipeline_mode = #tpu.pipeline_mode<synchronous>, transform_indices = @transform_7, window_bounds = array<i64: 128, 128>}, {pipeline_mode = #tpu.pipeline_mode<synchronous>, transform_indices = @transform_8, window_bounds = array<i64: 1, 128>}, {transform_indices = @transform_9, window_bounds = array<i64: 8, 128>}]} {
    %c0 = arith.constant 0 : index
    %c0_0 = arith.constant 0 : index
    %0 = vector.load %arg1[%c0, %c0_0] : memref<8x16xf32, #tpu.memory_space<vmem>>, vector<8x16xf32>
    %1 = arith.truncf %0 : vector<8x16xf32> to vector<8x16xbf16>
    %c0_1 = arith.constant 0 : index
    %c0_2 = arith.constant 0 : index
    %2 = vector.load %arg3[%c0_1, %c0_2] : memref<16x128xbf16, #tpu.memory_space<vmem>>, vector<16x128xbf16>
    %cst = arith.constant dense<0.000000e+00> : vector<8x128xf32>
    %3 = tpu.matmul %1, %2, %cst {dimension_numbers = #tpu.dot_dimension_numbers<[1], [0], [0], [1], [0, 0, 1, 1], [], []>} : vector<8x16xbf16>, vector<16x128xbf16>, vector<8x128xf32> -> vector<8x128xf32>
    %c0_3 = arith.constant 0 : index
    %c0_4 = arith.constant 0 : index
    %4 = vector.load %arg2[%c0_3, %c0_4] : memref<8x16xf32, #tpu.memory_space<vmem>>, vector<8x16xf32>
    %5 = arith.truncf %4 : vector<8x16xf32> to vector<8x16xbf16>
    %c0_5 = arith.constant 0 : index
    %c0_6 = arith.constant 0 : index
    %6 = vector.load %arg4[%c0_5, %c0_6] : memref<16x128xbf16, #tpu.memory_space<vmem>>, vector<16x128xbf16>
    %cst_7 = arith.constant dense<0.000000e+00> : vector<8x128xf32>
    %7 = tpu.matmul %5, %6, %cst_7 {dimension_numbers = #tpu.dot_dimension_numbers<[1], [0], [0], [1], [0, 0, 1, 1], [], []>} : vector<8x16xbf16>, vector<16x128xbf16>, vector<8x128xf32> -> vector<8x128xf32>
    %8 = arith.addf %3, %7 : vector<8x128xf32>
    %c0_8 = arith.constant 0 : index
    %c0_9 = arith.constant 0 : index
    %9 = vector.load %arg5[%c0_8, %c0_9] : memref<1x128xf32, #tpu.memory_space<vmem>>, vector<1x128xf32>
    %10 = vector.broadcast %9 : vector<1x128xf32> to vector<8x128xf32>
    %11 = arith.addf %8, %10 : vector<8x128xf32>
    %cst_10 = arith.constant 0.000000e+00 : f32
    %12 = vector.broadcast %cst_10 : f32 to vector<8x128xf32>
    %13 = arith.maximumf %11, %12 : vector<8x128xf32>
    %14 = arith.truncf %13 : vector<8x128xf32> to vector<8x128xbf16>
    %c0_11 = arith.constant 0 : index
    %c0_12 = arith.constant 0 : index
    %15 = vector.load %arg6[%c0_11, %c0_12] : memref<128x128xbf16, #tpu.memory_space<vmem>>, vector<128x128xbf16>
    %cst_13 = arith.constant dense<0.000000e+00> : vector<8x128xf32>
    %16 = tpu.matmul %14, %15, %cst_13 {dimension_numbers = #tpu.dot_dimension_numbers<[1], [0], [0], [1], [0, 0, 1, 1], [], []>} : vector<8x128xbf16>, vector<128x128xbf16>, vector<8x128xf32> -> vector<8x128xf32>
    %c0_14 = arith.constant 0 : index
    %c0_15 = arith.constant 0 : index
    %17 = vector.load %arg7[%c0_14, %c0_15] : memref<1x128xf32, #tpu.memory_space<vmem>>, vector<1x128xf32>
    %18 = vector.broadcast %17 : vector<1x128xf32> to vector<8x128xf32>
    %19 = arith.addf %16, %18 : vector<8x128xf32>
    %cst_16 = arith.constant 0.000000e+00 : f32
    %20 = vector.broadcast %cst_16 : f32 to vector<8x128xf32>
    %21 = arith.maximumf %19, %20 : vector<8x128xf32>
    %22 = arith.truncf %21 : vector<8x128xf32> to vector<8x128xbf16>
    %c0_17 = arith.constant 0 : index
    %c0_18 = arith.constant 0 : index
    %23 = vector.load %arg8[%c0_17, %c0_18] : memref<128x128xbf16, #tpu.memory_space<vmem>>, vector<128x128xbf16>
    %cst_19 = arith.constant dense<0.000000e+00> : vector<8x128xf32>
    %24 = tpu.matmul %22, %23, %cst_19 {dimension_numbers = #tpu.dot_dimension_numbers<[1], [0], [0], [1], [0, 0, 1, 1], [], []>} : vector<8x128xbf16>, vector<128x128xbf16>, vector<8x128xf32> -> vector<8x128xf32>
    %c0_20 = arith.constant 0 : index
    %c0_21 = arith.constant 0 : index
    %25 = vector.load %arg9[%c0_20, %c0_21] : memref<1x128xf32, #tpu.memory_space<vmem>>, vector<1x128xf32>
    %26 = vector.broadcast %25 : vector<1x128xf32> to vector<8x128xf32>
    %27 = arith.addf %24, %26 : vector<8x128xf32>
    %28 = arith.truncf %27 : vector<8x128xf32> to vector<8x128xbf16>
    %c0_22 = arith.constant 0 : index
    %c0_23 = arith.constant 0 : index
    %29 = vector.load %arg10[%c0_22, %c0_23] : memref<8x128xbf16, #tpu.memory_space<vmem>>, vector<8x128xbf16>
    tpu.vector_store %arg10[%c0_22, %c0_23], %28 {strides = array<i32>} : memref<8x128xbf16, #tpu.memory_space<vmem>>, vector<8x128xbf16>,
    return
  }
  func.func @transform_0(%arg0: i32) -> (i32, i32) {
    %c0_i32 = arith.constant 0 : i32
    %c0_i32_0 = arith.constant 0 : i32
    return %arg0, %c0_i32 : i32, i32
  }
  func.func @transform_1(%arg0: i32) -> (i32, i32) {
    %c0_i32 = arith.constant 0 : i32
    %c0_i32_0 = arith.constant 0 : i32
    return %arg0, %c0_i32 : i32, i32
  }
  func.func @transform_2(%arg0: i32) -> (i32, i32) {
    %c0_i32 = arith.constant 0 : i32
    %c0_i32_0 = arith.constant 0 : i32
    %c0_i32_1 = arith.constant 0 : i32
    return %c0_i32, %c0_i32_0 : i32, i32
  }
  func.func @transform_3(%arg0: i32) -> (i32, i32) {
    %c0_i32 = arith.constant 0 : i32
    %c0_i32_0 = arith.constant 0 : i32
    %c0_i32_1 = arith.constant 0 : i32
    return %c0_i32, %c0_i32_0 : i32, i32
  }
  func.func @transform_4(%arg0: i32) -> (i32, i32) {
    %c0_i32 = arith.constant 0 : i32
    %c0_i32_0 = arith.constant 0 : i32
    %c0_i32_1 = arith.constant 0 : i32
    return %c0_i32, %c0_i32_0 : i32, i32
  }
  func.func @transform_5(%arg0: i32) -> (i32, i32) {
    %c0_i32 = arith.constant 0 : i32
    %c0_i32_0 = arith.constant 0 : i32
    %c0_i32_1 = arith.constant 0 : i32
    return %c0_i32, %c0_i32_0 : i32, i32
  }
  func.func @transform_6(%arg0: i32) -> (i32, i32) {
    %c0_i32 = arith.constant 0 : i32
    %c0_i32_0 = arith.constant 0 : i32
    %c0_i32_1 = arith.constant 0 : i32
    return %c0_i32, %c0_i32_0 : i32, i32
  }
  func.func @transform_7(%arg0: i32) -> (i32, i32) {
    %c0_i32 = arith.constant 0 : i32
    %c0_i32_0 = arith.constant 0 : i32
    %c0_i32_1 = arith.constant 0 : i32
    return %c0_i32, %c0_i32_0 : i32, i32
  }
  func.func @transform_8(%arg0: i32) -> (i32, i32) {
    %c0_i32 = arith.constant 0 : i32
    %c0_i32_0 = arith.constant 0 : i32
    %c0_i32_1 = arith.constant 0 : i32
    return %c0_i32, %c0_i32_0 : i32, i32
  }
  func.func @transform_9(%arg0: i32) -> (i32, i32) {
    %c0_i32 = arith.constant 0 : i32
    %c0_i32_0 = arith.constant 0 : i32
    return %arg0, %c0_i32 : i32, i32
  }
}

</mosaic_0001>

<llo_original>
// kernel: critic_forward.1
$region0: #{critic_forward.1}
  #allocation0 [shape = 'u32[]', space=smem, size = 0x4, offset = 0x4, fixed_abs, tag = 'smem constant byte address 0x4 - core index']
  #allocation1 [shape = 'u32[72,128]{1,0:T(1,128)}', space=vmem, size = 0x9000, scoped, tag = 'internal scratch']
  %s0 = inlined_call_operand.vmem [shape: f32[8,16], index: 0, kind: input, shape index: {}]
  %s1 = inlined_call_operand.vmem [shape: f32[8,16], index: 1, kind: input, shape index: {}]
  %s2 = inlined_call_operand.vmem [shape: bf16[16,128], index: 2, kind: input, shape index: {}]
  %s3 = inlined_call_operand.vmem [shape: bf16[16,128], index: 3, kind: input, shape index: {}]
  %s4 = inlined_call_operand.vmem [shape: f32[1,128], index: 4, kind: input, shape index: {}]
  %s5 = inlined_call_operand.hbm [shape: bf16[128,128], index: 5, kind: input, shape index: {}]
  %s6 = inlined_call_operand.vmem [shape: f32[1,128], index: 6, kind: input, shape index: {}]
  %s7 = inlined_call_operand.hbm [shape: bf16[128,128], index: 7, kind: input, shape index: {}]
  %s8 = inlined_call_operand.vmem [shape: f32[1,128], index: 8, kind: input, shape index: {}]
  %s9 = inlined_call_operand.vmem [shape: bf16[8,128], index: 9, kind: output, shape index: {}]
  %s10 = sld [smem:[#allocation0]]
  $region54: #{critic_forward.1} parent=0
    _
  %s12 = ssub.s32 1, %s10
  %s13 = scalar_select 0, %s12, %s10
  $region1: #{critic_forward.1} parent=0
    #allocation2 [shape = 'u8[32768]{0}', space=vmem, size = 0x8000, scoped, tag = 'input window, operand 5, single buffered']
    #allocation3 [shape = 's32[1]{0}', space=sflag, size = 0x4, scoped, tag = 'scoped memory for critic_forward.1']
    #allocation4 [shape = 'u8[32768]{0}', space=vmem, size = 0x8000, scoped, tag = 'input window, operand 7, single buffered']
    #allocation5 [shape = 's32[1]{0}', space=sflag, size = 0x4, scoped, tag = 'scoped memory for critic_forward.1']
    %14 = vsyncpa [#allocation3], 0
    %15 = vsyncpa [#allocation5], 0
    // Predicated region
    $region2: #{critic_forward.1} parent=1 // pred_check
      _
    $region3: #{critic_forward.1} parent=1 // pred_check_branch
      %17 = sbr.rel (0) target = $region5
    $region4: #{critic_forward.1} parent=1 // pred_region
      _
    $region5: #{critic_forward.1} parent=1 // pred_fallthru
      _
    // Predicated region
    $region6: #{critic_forward.1} parent=1 // pred_check
      _
    $region7: #{critic_forward.1} parent=1 // pred_check_branch
      %19 = sbr.rel (0) target = $region9
    $region8: #{critic_forward.1} parent=1 // pred_region
      _
    $region9: #{critic_forward.1} parent=1 // pred_fallthru
      _
    // Predicated region
    $region10: #{critic_forward.1} parent=1 // pred_check
      _
    $region11: #{critic_forward.1} parent=1 // pred_check_branch
      %21 = sbr.rel (0) target = $region13
    $region12: #{critic_forward.1} parent=1 // pred_region
      _
    $region13: #{critic_forward.1} parent=1 // pred_fallthru
      _
    // Predicated region
    $region14: #{critic_forward.1} parent=1 // pred_check
      _
    $region15: #{critic_forward.1} parent=1 // pred_check_branch
      %23 = sbr.rel (0) target = $region17
    $region16: #{critic_forward.1} parent=1 // pred_region
      _
    $region17: #{critic_forward.1} parent=1 // pred_fallthru
      _
    // Predicated region
    $region18: #{critic_forward.1} parent=1 // pred_check
      _
    $region19: #{critic_forward.1} parent=1 // pred_check_branch
      %25 = sbr.rel (0) target = $region21
    $region20: #{critic_forward.1} parent=1 // pred_region
      _
    $region21: #{critic_forward.1} parent=1 // pred_fallthru
      _
    // Predicated region
    $region22: #{critic_forward.1} parent=1 // pred_check
      _
    $region23: #{critic_forward.1} parent=1 // pred_check_branch
      %27 = sbr.rel (0) target = $region25
    $region24: #{critic_forward.1} parent=1 // pred_region
      %29 = vsyncadd [#allocation3], 0
      %s30 = sshll.u32 %s5, 4
      %s31 = int_to_ptr.hbm [resolvable:$true] %s30
      %s32 = sshll.u32 [#allocation2], 4
      %s33 = int_to_ptr.vmem [resolvable:$true] %s32
      %38 = dma.hbm_to_vmem [thread:$0]  %s31, 1024, %s33, [#allocation3], 64, 64, 4
    $region25: #{critic_forward.1} parent=1 // pred_fallthru
      _
    // Predicated region
    $region26: #{critic_forward.1} parent=1 // pred_check
      _
    $region27: #{critic_forward.1} parent=1 // pred_check_branch
      %40 = sbr.rel (0) target = $region29
    $region28: #{critic_forward.1} parent=1 // pred_region
      _
    $region29: #{critic_forward.1} parent=1 // pred_fallthru
      _
    // Predicated region
    $region30: #{critic_forward.1} parent=1 // pred_check
      _
    $region31: #{critic_forward.1} parent=1 // pred_check_branch
      %42 = sbr.rel (0) target = $region33
    $region32: #{critic_forward.1} parent=1 // pred_region
      %44 = vsyncadd [#allocation5], 0
      %s45 = sshll.u32 %s7, 4
      %s46 = int_to_ptr.hbm [resolvable:$true] %s45
      %s47 = sshll.u32 [#allocation4], 4
      %s48 = int_to_ptr.vmem [resolvable:$true] %s47
      %53 = dma.hbm_to_vmem [thread:$0]  %s46, 1024, %s48, [#allocation5], 64, 64, 4
    $region33: #{critic_forward.1} parent=1 // pred_fallthru
      _
    // Predicated region
    $region34: #{critic_forward.1} parent=1 // pred_check
      _
    $region35: #{critic_forward.1} parent=1 // pred_check_branch
      %55 = sbr.rel (0) target = $region37
    $region36: #{critic_forward.1} parent=1 // pred_region
      _
    $region37: #{critic_forward.1} parent=1 // pred_fallthru
      _
    // Predicated region
    $region38: #{critic_forward.1} parent=1 // pred_check
      _
    $region39: #{critic_forward.1} parent=1 // pred_check_branch
      %57 = sbr.rel (0) target = $region41
    $region40: #{critic_forward.1} parent=1 // pred_region
      %59 = dma.done [#allocation3], 1024
    $region41: #{critic_forward.1} parent=1 // pred_fallthru
      _
    // Predicated region
    $region42: #{critic_forward.1} parent=1 // pred_check
      _
    $region43: #{critic_forward.1} parent=1 // pred_check_branch
      %61 = sbr.rel (0) target = $region45
    $region44: #{critic_forward.1} parent=1 // pred_region
      %63 = dma.done [#allocation5], 1024
    $region45: #{critic_forward.1} parent=1 // pred_fallthru
      _
    %v65 = vld [vmem:[%s0] sm:$0xff]
    %v66 = vpack.c.bf16 %v65, %v65
    %v67 = vld [vmem:[%s2] sm:$0xf]
    %v68 = vld [vmem:[%s2 + $0x4] sm:$0xf]
    %v69 = vld [vmem:[%s1] sm:$0xff]
    %v70 = vpack.c.bf16 %v69, %v69
    %v71 = vld [vmem:[%s3] sm:$0xf]
    %v72 = vld [vmem:[%s3 + $0x4] sm:$0xf]
    %v75 = vunpack.c.l.b16 %v71
    %v76 = vunpack.c.l.b16 %v72
    %v77 = vpack.c.b16 %v76, %v75
    %vm79 = vcmask 130048
    %v81 = vsel %vm79, %v70, 0
    %83 = vmatpush.bf16.msra.mxu0 0
    %84 = vmatpush.bf16.msra.mxu0 0
    %85 = vmatpush.bf16.msra.mxu0 0
    %86 = vmatpush.bf16.msra.mxu0 0
    %87 = vmatpush.bf16.msra.mxu0 0
    %88 = vmatpush.bf16.msra.mxu0 0
    %89 = vmatpush.bf16.msra.mxu0 0
    %90 = vmatpush.bf16.msra.mxu0 %v77
    %91 = vmatmul.bf16.gmra.mxu0 %v81
    %v92 = vpop.f32.mrf.mxu0
    %v93 = vadd.f32 0.0, %v92
    %v94 = vpop.f32.mrf.mxu0
    %95 = vdwg.mxu0
    %v98 = vunpack.c.l.b16 %v67
    %v99 = vunpack.c.l.b16 %v68
    %v100 = vpack.c.b16 %v99, %v98
    %v103 = vsel %vm79, %v66, 0
    %105 = vmatpush.bf16.msra.mxu0 0
    %106 = vmatpush.bf16.msra.mxu0 0
    %107 = vmatpush.bf16.msra.mxu0 0
    %108 = vmatpush.bf16.msra.mxu0 0
    %109 = vmatpush.bf16.msra.mxu0 0
    %110 = vmatpush.bf16.msra.mxu0 0
    %111 = vmatpush.bf16.msra.mxu0 0
    %112 = vmatpush.bf16.msra.mxu0 %v100
    %113 = vmatmul.bf16.gmra.mxu0 %v103
    %v114 = vpop.f32.mrf.mxu0
    %v115 = vadd.f32 %v93, %v114
    %v116 = vpop.f32.mrf.mxu0
    %117 = vdwg.mxu0
    %v118 = vld [vmem:[%s4] sm:$0x1]
    %v120 = vperm.slane %v118, 0
    %v122 = vadd.f32 %v115, %v120
    %v123 = vmax.f32 %v122, 0.0
    %v124 = vpack.c.bf16 %v123, %v123
    %v125 = vld [vmem:[#allocation2] sm:$0xf]
    %v126 = vld [vmem:[#allocation2 + $0x4] sm:$0xf]
    %v127 = vld [vmem:[#allocation2 + $0x8] sm:$0xf]
    %v128 = vld [vmem:[#allocation2 + $0xc] sm:$0xf]
    %v129 = vld [vmem:[#allocation2 + $0x10] sm:$0xf]
    %v130 = vld [vmem:[#allocation2 + $0x14] sm:$0xf]
    %v131 = vld [vmem:[#allocation2 + $0x18] sm:$0xf]
    %v132 = vld [vmem:[#allocation2 + $0x1c] sm:$0xf]
    %v133 = vld [vmem:[#allocation2 + $0x20] sm:$0xf]
    %v134 = vld [vmem:[#allocation2 + $0x24] sm:$0xf]
    %v135 = vld [vmem:[#allocation2 + $0x28] sm:$0xf]
    %v136 = vld [vmem:[#allocation2 + $0x2c] sm:$0xf]
    %v137 = vld [vmem:[#allocation2 + $0x30] sm:$0xf]
    %v138 = vld [vmem:[#allocation2 + $0x34] sm:$0xf]
    %v139 = vld [vmem:[#allocation2 + $0x38] sm:$0xf]
    %v140 = vld [vmem:[#allocation2 + $0x3c] sm:$0xf]
    %v141 = vld [vmem:[%s6] sm:$0x1]
    %v143 = vperm.slane %v141, 0
    %v161 = vunpack.c.l.b16 %v125
    %v162 = vunpack.c.l.b16 %v126
    %v163 = vunpack.c.l.b16 %v127
    %v164 = vunpack.c.l.b16 %v128
    %v165 = vunpack.c.l.b16 %v129
    %v166 = vunpack.c.l.b16 %v130
    %v167 = vunpack.c.l.b16 %v131
    %v168 = vunpack.c.l.b16 %v132
    %v169 = vunpack.c.l.b16 %v133
    %v170 = vunpack.c.l.b16 %v134
    %v171 = vunpack.c.l.b16 %v135
    %v172 = vunpack.c.l.b16 %v136
    %v173 = vunpack.c.l.b16 %v137
    %v174 = vunpack.c.l.b16 %v138
    %v175 = vunpack.c.l.b16 %v139
    %v176 = vunpack.c.l.b16 %v140
    %v177 = vpack.c.b16 %v162, %v161
    %v178 = vpack.c.b16 %v164, %v163
    %v179 = vpack.c.b16 %v166, %v165
    %v180 = vpack.c.b16 %v168, %v167
    %v181 = vpack.c.b16 %v170, %v169
    %v182 = vpack.c.b16 %v172, %v171
    %v183 = vpack.c.b16 %v174, %v173
    %v184 = vpack.c.b16 %v176, %v175
    %193 = vmatpush.bf16.msra.mxu0 %v184
    %194 = vmatpush.bf16.msra.mxu0 %v183
    %195 = vmatpush.bf16.msra.mxu0 %v182
    %196 = vmatpush.bf16.msra.mxu0 %v181
    %197 = vmatpush.bf16.msra.mxu0 %v180
    %198 = vmatpush.bf16.msra.mxu0 %v179
    %199 = vmatpush.bf16.msra.mxu0 %v178
    %200 = vmatpush.bf16.msra.mxu0 %v177
    %201 = vmatmul.bf16.gmra.mxu0 %v124
    %v202 = vpop.f32.mrf.mxu0
    %v203 = vadd.f32 %v143, %v202
    %v204 = vpop.f32.mrf.mxu0
    %205 = vdwg.mxu0
    %v206 = vmax.f32 %v203, 0.0
    %v207 = vpack.c.bf16 %v206, %v206
    %v208 = vld [vmem:[#allocation4] sm:$0xf]
    %v209 = vld [vmem:[#allocation4 + $0x4] sm:$0xf]
    %v210 = vld [vmem:[#allocation4 + $0x8] sm:$0xf]
    %v211 = vld [vmem:[#allocation4 + $0xc] sm:$0xf]
    %v212 = vld [vmem:[#allocation4 + $0x10] sm:$0xf]
    %v213 = vld [vmem:[#allocation4 + $0x14] sm:$0xf]
    %v214 = vld [vmem:[#allocation4 + $0x18] sm:$0xf]
    %v215 = vld [vmem:[#allocation4 + $0x1c] sm:$0xf]
    %v216 = vld [vmem:[#allocation4 + $0x20] sm:$0xf]
    %v217 = vld [vmem:[#allocation4 + $0x24] sm:$0xf]
    %v218 = vld [vmem:[#allocation4 + $0x28] sm:$0xf]
    %v219 = vld [vmem:[#allocation4 + $0x2c] sm:$0xf]
    %v220 = vld [vmem:[#allocation4 + $0x30] sm:$0xf]
    %v221 = vld [vmem:[#allocation4 + $0x34] sm:$0xf]
    %v222 = vld [vmem:[#allocation4 + $0x38] sm:$0xf]
    %v223 = vld [vmem:[#allocation4 + $0x3c] sm:$0xf]
    %v224 = vld [vmem:[%s8] sm:$0x1]
    %v226 = vperm.slane %v224, 0
    %v244 = vunpack.c.l.b16 %v208
    %v245 = vunpack.c.l.b16 %v209
    %v246 = vunpack.c.l.b16 %v210
    %v247 = vunpack.c.l.b16 %v211
    %v248 = vunpack.c.l.b16 %v212
    %v249 = vunpack.c.l.b16 %v213
    %v250 = vunpack.c.l.b16 %v214
    %v251 = vunpack.c.l.b16 %v215
    %v252 = vunpack.c.l.b16 %v216
    %v253 = vunpack.c.l.b16 %v217
    %v254 = vunpack.c.l.b16 %v218
    %v255 = vunpack.c.l.b16 %v219
    %v256 = vunpack.c.l.b16 %v220
    %v257 = vunpack.c.l.b16 %v221
    %v258 = vunpack.c.l.b16 %v222
    %v259 = vunpack.c.l.b16 %v223
    %v260 = vpack.c.b16 %v245, %v244
    %v261 = vpack.c.b16 %v247, %v246
    %v262 = vpack.c.b16 %v249, %v248
    %v263 = vpack.c.b16 %v251, %v250
    %v264 = vpack.c.b16 %v253, %v252
    %v265 = vpack.c.b16 %v255, %v254
    %v266 = vpack.c.b16 %v257, %v256
    %v267 = vpack.c.b16 %v259, %v258
    %276 = vmatpush.bf16.msra.mxu0 %v267
    %277 = vmatpush.bf16.msra.mxu0 %v266
    %278 = vmatpush.bf16.msra.mxu0 %v265
    %279 = vmatpush.bf16.msra.mxu0 %v264
    %280 = vmatpush.bf16.msra.mxu0 %v263
    %281 = vmatpush.bf16.msra.mxu0 %v262
    %282 = vmatpush.bf16.msra.mxu0 %v261
    %283 = vmatpush.bf16.msra.mxu0 %v260
    %284 = vmatmul.bf16.gmra.mxu0 %v207
    %v285 = vpop.f32.mrf.mxu0
    %v286 = vadd.f32 %v226, %v285
    %v287 = vpop.f32.mrf.mxu0
    %288 = vdwg.mxu0
    %v289 = vpack.c.bf16 %v286, %v286
    %290 = vst [vmem:[%s9] sm:$0xf] %v289
    // Predicated region
    $region46: #{critic_forward.1} parent=1 // pred_check
      _
    $region47: #{critic_forward.1} parent=1 // pred_check_branch
      %292 = sbr.rel (0) target = $region49
    $region48: #{critic_forward.1} parent=1 // pred_region
      _
    $region49: #{critic_forward.1} parent=1 // pred_fallthru
      _
    // Predicated region
    $region50: #{critic_forward.1} parent=1 // pred_check
      _
    $region51: #{critic_forward.1} parent=1 // pred_check_branch
      %294 = sbr.rel (0) target = $region53
    $region52: #{critic_forward.1} parent=1 // pred_region
      _
    $region53: #{critic_forward.1} parent=1 // pred_fallthru
      _
    %295 = vsyncpa [#allocation3], 1
    %296 = vsyncpa [#allocation5], 1

</llo_original>
